<compile_context>
chip_gen: v6e
topology: v6e:2x2x1
jax: 0.10.0
libtpu: 0.0.40
codegen_flags: <defaults>
</compile_context>

<pallas_src>
import functools

import jax
import jax.numpy as jnp
from jax.experimental import pallas as pl
from jax.experimental.pallas import tpu as pltpu

LN_EPS = 1e-5
LANE = 128
SUBLANE = 8
DEFAULT_BLOCK_B = 512          # batch rows per grid step (multiple of 8)


def _round_up(x, m):
    return ((x + m - 1) // m) * m


# ---------------------------------------------------------------------------
# Fused kernel: for one batch tile, run all Linear+LN+ReLU blocks + both heads.
# Ref order: x, (w0, bgb0), (w1, bgb1), ..., w_heads, mu_out, sigma_out
# ---------------------------------------------------------------------------
def _make_fused_kernel(hidden_true, hidden_pad, dout_pad):
    n_layers = len(hidden_true) - 1

    def kernel(*refs):
        x_ref = refs[0]
        layer_refs = refs[1:1 + 2 * n_layers]
        wheads_ref = refs[1 + 2 * n_layers]
        mu_ref = refs[2 + 2 * n_layers]
        sigma_ref = refs[3 + 2 * n_layers]

        h = x_ref[...]                                   # [TB, Din_pad] f32
        for li in range(n_layers):
            w_ref = layer_refs[2 * li]                   # [Din_pad, Dout_pad]
            bgb_ref = layer_refs[2 * li + 1]             # [3, Dout_pad] (b, gamma, beta)
            d_true = hidden_true[li + 1]
            d_pad = hidden_pad[li + 1]

            z = jnp.dot(h, w_ref[...], preferred_element_type=jnp.float32)
            z = z + bgb_ref[0:1, :]                      # bias (padded lanes are 0)

            inv_d = 1.0 / float(d_true)                  # hoisted, true feature count
            mean = jnp.sum(z, axis=-1, keepdims=True) * inv_d
            centered = z - mean
            if d_pad != d_true:                          # mask padded lanes out of stats
                lane = jax.lax.broadcasted_iota(jnp.int32, z.shape, 1)
                centered = jnp.where(lane < d_true, centered, 0.0)
            var = jnp.sum(centered * centered, axis=-1, keepdims=True) * inv_d
            inv_std = jax.lax.rsqrt(var + LN_EPS)
            y = centered * inv_std * bgb_ref[1:2, :] + bgb_ref[2:3, :]
            h = jnp.maximum(y, 0.0)                      # ReLU; padded lanes stay 0

        # Fused heads: one wide matmul, then split into mu / logvar halves.
        zh = jnp.dot(h, wheads_ref[...], preferred_element_type=jnp.float32)
        mu_ref[...] = zh[:, :dout_pad].astype(mu_ref.dtype)
        sigma_ref[...] = jnp.exp(zh[:, dout_pad:] * 0.5).astype(sigma_ref.dtype)

    return kernel


# ---------------------------------------------------------------------------
# Wrapper: padding, BlockSpecs, grid, VMEM budget.
# ---------------------------------------------------------------------------
def _forward_impl(params, x, block_b=DEFAULT_BLOCK_B):
    layers = params["layers"]
    w_mu, w_lv = params["w_mu"], params["w_logvar"]

    B, d_in = x.shape
    d_out = w_mu.shape[1]

    hidden_true = [d_in] + [w.shape[1] for (w, _, _, _) in layers]
    hidden_pad = [_round_up(d, LANE) for d in hidden_true]
    dout_pad = _round_up(d_out, LANE)

    # Batch tiling: tile rows must be a multiple of 8 sublanes.
    b8 = _round_up(B, SUBLANE)
    tb = min(_round_up(block_b, SUBLANE), b8)
    b_pad = _round_up(b8, tb)

    f32 = jnp.float32
    x_p = jnp.pad(x.astype(f32), ((0, b_pad - B), (0, hidden_pad[0] - d_in)))

    # Zero-pad weights to lane-aligned shapes; pack (b, gamma, beta) per layer.
    w_inputs = []
    for li, (w, b, gamma, beta) in enumerate(layers):
        n, m = w.shape
        n_p, m_p = hidden_pad[li], hidden_pad[li + 1]
        w_p = jnp.pad(w.astype(f32), ((0, n_p - n), (0, m_p - m)))
        bgb = jnp.stack([b, gamma, beta], axis=0).astype(f32)        # [3, m]
        bgb_p = jnp.pad(bgb, ((0, 0), (0, m_p - m)))
        w_inputs += [w_p, bgb_p]

    dh_true, dh_pad = hidden_true[-1], hidden_pad[-1]
    wmu_p = jnp.pad(w_mu.astype(f32), ((0, dh_pad - dh_true), (0, dout_pad - d_out)))
    wlv_p = jnp.pad(w_lv.astype(f32), ((0, dh_pad - dh_true), (0, dout_pad - d_out)))
    w_heads = jnp.concatenate([wmu_p, wlv_p], axis=1)                # [dh_pad, 2*dout_pad]

    kernel = _make_fused_kernel(hidden_true, hidden_pad, dout_pad)

    grid = (b_pad // tb,)
    resident = lambda shape: pl.BlockSpec(shape, lambda i: (0, 0))   # weights stay put
    in_specs = [pl.BlockSpec((tb, hidden_pad[0]), lambda i: (i, 0))] # x streams
    in_specs += [resident(a.shape) for a in w_inputs]
    in_specs.append(resident(w_heads.shape))
    out_specs = (pl.BlockSpec((tb, dout_pad), lambda i: (i, 0)),
                 pl.BlockSpec((tb, dout_pad), lambda i: (i, 0)))
    out_shape = (jax.ShapeDtypeStruct((b_pad, dout_pad), f32),
                 jax.ShapeDtypeStruct((b_pad, dout_pad), f32))

    # VMEM budget: resident weights + double-buffered streamed tiles + working set.
    bpe = 4
    weight_bytes = (sum(int(a.size) for a in w_inputs) + int(w_heads.size)) * bpe
    stream_bytes = 2 * (tb * hidden_pad[0] + 2 * tb * dout_pad) * bpe
    work_bytes = 4 * tb * max(hidden_pad + [2 * dout_pad]) * bpe
    est = weight_bytes + stream_bytes + work_bytes
    vmem_limit = int(min(max(2 * est, 32 * 1024 * 1024), 64 * 1024 * 1024))

    mu_p, sigma_p = pl.pallas_call(
        kernel,
        out_shape=out_shape,
        grid=grid,
        in_specs=in_specs,
        out_specs=out_specs,
        compiler_params=pltpu.CompilerParams(
            dimension_semantics=("parallel",),   # batch tiles -> both TCs on v7x
            vmem_limit_bytes=vmem_limit,
        ),
    )(x_p, *w_inputs, w_heads)

    # Strip batch / lane padding outside the kernel (cheap slice).
    return mu_p[:B, :d_out], sigma_p[:B, :d_out]


mlp_normal_forward = jax.jit(_forward_impl, static_argnames=("block_b",))


# ---------------------------------------------------------------------------
# Parameter init (deterministic, PyTorch-Linear-style uniform bounds)
# ---------------------------------------------------------------------------
def init_params(key, dims):
    """dims has length >= 3; hidden stack uses dims[:-1], heads use dims[-2:]."""
    assert len(dims) >= 3
    params = {"layers": []}
    hidden = dims[:-1]
    for i in range(len(hidden) - 1):
        n, m = hidden[i], hidden[i + 1]
        key, kw, kb = jax.random.split(key, 3)
        bound = 1.0 / (n ** 0.5)
        w = jax.random.uniform(kw, (n, m), jnp.float32, -bound, bound)
        b = jax.random.uniform(kb, (m,), jnp.float32, -bound, bound)
        gamma = jnp.ones((m,), jnp.float32)      # LayerNorm affine init
        beta = jnp.zeros((m,), jnp.float32)
        params["layers"].append((w, b, gamma, beta))
    n, m = dims[-2], dims[-1]
    key, kmu, klv = jax.random.split(key, 3)
    bound = 1.0 / (n ** 0.5)
    params["w_mu"] = jax.random.uniform(kmu, (n, m), jnp.float32, -bound, bound)
    params["w_logvar"] = jax.random.uniform(klv, (n, m), jnp.float32, -bound, bound)
    return params


# ---------------------------------------------------------------------------
# Pure-JAX reference (matches MLPNormal.forward semantics)
# ---------------------------------------------------------------------------
def reference_forward(params, x):
    h = x
    for (w, b, gamma, beta) in params["layers"]:
        z = h @ w + b
        mean = jnp.mean(z, axis=-1, keepdims=True)
        var = jnp.mean((z - mean) ** 2, axis=-1, keepdims=True)
        z = (z - mean) / jnp.sqrt(var + LN_EPS) * gamma + beta
        h = jnp.maximum(z, 0.0)
    mu = h @ params["w_mu"]
    sigma = jnp.exp((h @ params["w_logvar"]) * 0.5)
    return mu, sigma


if __name__ == "__main__":
    dims = [16, 32, 32, 8]          # >= 3 entries, as required by MLPNormal
    batch = 8

    key = jax.random.PRNGKey(0)
    key, kx = jax.random.split(key)
    x = jax.random.normal(kx, (batch, dims[0]), jnp.float32)

    params = init_params(key, dims)

    mu, sigma = mlp_normal_forward(params, x)
    jax.block_until_ready((mu, sigma))

    mu_ref, sigma_ref = reference_forward(params, x)
    assert mu.shape == (batch, dims[-1]) and sigma.shape == (batch, dims[-1])
    assert jnp.allclose(mu, mu_ref, atol=1e-4, rtol=1e-4), \
        float(jnp.max(jnp.abs(mu - mu_ref)))
    assert jnp.allclose(sigma, sigma_ref, atol=1e-4, rtol=1e-4), \
        float(jnp.max(jnp.abs(sigma - sigma_ref)))
    assert bool(jnp.all(sigma > 0.0))

    print("KERNEL_OK")
</pallas_src>

<mosaic_0001>
module attributes {stable_mosaic.version = 11 : i64} {
  func.func @kernel(%arg0: i32, %arg1: memref<8x128xf32, #tpu.memory_space<vmem>>, %arg2: memref<128x128xf32, #tpu.memory_space<vmem>>, %arg3: memref<3x128xf32, #tpu.memory_space<vmem>>, %arg4: memref<128x128xf32, #tpu.memory_space<vmem>>, %arg5: memref<3x128xf32, #tpu.memory_space<vmem>>, %arg6: memref<128x256xf32, #tpu.memory_space<vmem>>, %arg7: memref<8x128xf32, #tpu.memory_space<vmem>>, %arg8: memref<8x128xf32, #tpu.memory_space<vmem>>) attributes {dimension_semantics = [#tpu.dimension_semantics<parallel>], iteration_bounds = array<i64: 1>, scalar_prefetch = 0 : i64, scratch_operands = 0 : i64, tpu.core_type = #tpu.core_type<tc>, window_params = [{transform_indices = @transform_0, window_bounds = array<i64: 8, 128>}, {pipeline_mode = #tpu.pipeline_mode<synchronous>, transform_indices = @transform_1, window_bounds = array<i64: 128, 128>}, {pipeline_mode = #tpu.pipeline_mode<synchronous>, transform_indices = @transform_2, window_bounds = array<i64: 3, 128>}, {pipeline_mode = #tpu.pipeline_mode<synchronous>, transform_indices = @transform_3, window_bounds = array<i64: 128, 128>}, {pipeline_mode = #tpu.pipeline_mode<synchronous>, transform_indices = @transform_4, window_bounds = array<i64: 3, 128>}, {pipeline_mode = #tpu.pipeline_mode<synchronous>, transform_indices = @transform_5, window_bounds = array<i64: 128, 256>}, {transform_indices = @transform_6, window_bounds = array<i64: 8, 128>}, {transform_indices = @transform_7, window_bounds = array<i64: 8, 128>}]} {
    %c0 = arith.constant 0 : index
    %c0_0 = arith.constant 0 : index
    %0 = vector.load %arg1[%c0, %c0_0] : memref<8x128xf32, #tpu.memory_space<vmem>>, vector<8x128xf32>
    %c0_1 = arith.constant 0 : index
    %c0_2 = arith.constant 0 : index
    %1 = vector.load %arg2[%c0_1, %c0_2] : memref<128x128xf32, #tpu.memory_space<vmem>>, vector<128x128xf32>
    %cst = arith.constant dense<0.000000e+00> : vector<8x128xf32>
    %2 = tpu.matmul %0, %1, %cst {dimension_numbers = #tpu.dot_dimension_numbers<[1], [0], [0], [1], [0, 0, 1, 1], [], []>} : vector<8x128xf32>, vector<128x128xf32>, vector<8x128xf32> -> vector<8x128xf32>
    %c0_3 = arith.constant 0 : index
    %c0_4 = arith.constant 0 : index
    %3 = vector.load %arg3[%c0_3, %c0_4] : memref<3x128xf32, #tpu.memory_space<vmem>>, vector<1x128xf32>
    %4 = vector.broadcast %3 : vector<1x128xf32> to vector<8x128xf32>
    %5 = arith.addf %2, %4 : vector<8x128xf32>
    %cst_5 = arith.constant dense<0.000000e+00> : vector<8xf32>
    %6 = vector.multi_reduction <add>, %5, %cst_5 [1] : vector<8x128xf32> to vector<8xf32>
    %7 = vector.shape_cast %6 : vector<8xf32> to vector<8x1xf32>
    %cst_6 = arith.constant 3.125000e-02 : f32
    %8 = vector.broadcast %cst_6 : f32 to vector<8x1xf32>
    %9 = arith.mulf %7, %8 : vector<8x1xf32>
    %10 = vector.broadcast %9 : vector<8x1xf32> to vector<8x128xf32>
    %11 = arith.subf %5, %10 : vector<8x128xf32>
    %12 = tpu.iota {dimensions = array<i32: 1>} : vector<8x128xi32>
    %c32_i32 = arith.constant 32 : i32
    %13 = vector.broadcast %c32_i32 : i32 to vector<8x128xi32>
    %14 = arith.cmpi slt, %12, %13 : vector<8x128xi32>
    %cst_7 = arith.constant 0.000000e+00 : f32
    %15 = vector.broadcast %cst_7 : f32 to vector<8x128xf32>
    %16 = arith.select %14, %11, %15 : vector<8x128xi1>, vector<8x128xf32>
    %17 = arith.mulf %16, %16 : vector<8x128xf32>
    %cst_8 = arith.constant dense<0.000000e+00> : vector<8xf32>
    %18 = vector.multi_reduction <add>, %17, %cst_8 [1] : vector<8x128xf32> to vector<8xf32>
    %19 = vector.shape_cast %18 : vector<8xf32> to vector<8x1xf32>
    %cst_9 = arith.constant 3.125000e-02 : f32
    %20 = vector.broadcast %cst_9 : f32 to vector<8x1xf32>
    %21 = arith.mulf %19, %20 : vector<8x1xf32>
    %cst_10 = arith.constant 9.99999974E-6 : f32
    %22 = vector.broadcast %cst_10 : f32 to vector<8x1xf32>
    %23 = arith.addf %21, %22 : vector<8x1xf32>
    %24 = math.rsqrt %23 : vector<8x1xf32>
    %25 = vector.broadcast %24 : vector<8x1xf32> to vector<8x128xf32>
    %26 = arith.mulf %16, %25 : vector<8x128xf32>
    %c1 = arith.constant 1 : index
    %c0_11 = arith.constant 0 : index
    %27 = vector.load %arg3[%c1, %c0_11] : memref<3x128xf32, #tpu.memory_space<vmem>>, vector<1x128xf32>
    %28 = vector.broadcast %27 : vector<1x128xf32> to vector<8x128xf32>
    %29 = arith.mulf %26, %28 : vector<8x128xf32>
    %c2 = arith.constant 2 : index
    %c0_12 = arith.constant 0 : index
    %30 = vector.load %arg3[%c2, %c0_12] : memref<3x128xf32, #tpu.memory_space<vmem>>, vector<1x128xf32>
    %31 = vector.broadcast %30 : vector<1x128xf32> to vector<8x128xf32>
    %32 = arith.addf %29, %31 : vector<8x128xf32>
    %cst_13 = arith.constant 0.000000e+00 : f32
    %33 = vector.broadcast %cst_13 : f32 to vector<8x128xf32>
    %34 = arith.maximumf %32, %33 : vector<8x128xf32>
    %c0_14 = arith.constant 0 : index
    %c0_15 = arith.constant 0 : index
    %35 = vector.load %arg4[%c0_14, %c0_15] : memref<128x128xf32, #tpu.memory_space<vmem>>, vector<128x128xf32>
    %cst_16 = arith.constant dense<0.000000e+00> : vector<8x128xf32>
    %36 = tpu.matmul %34, %35, %cst_16 {dimension_numbers = #tpu.dot_dimension_numbers<[1], [0], [0], [1], [0, 0, 1, 1], [], []>} : vector<8x128xf32>, vector<128x128xf32>, vector<8x128xf32> -> vector<8x128xf32>
    %c0_17 = arith.constant 0 : index
    %c0_18 = arith.constant 0 : index
    %37 = vector.load %arg5[%c0_17, %c0_18] : memref<3x128xf32, #tpu.memory_space<vmem>>, vector<1x128xf32>
    %38 = vector.broadcast %37 : vector<1x128xf32> to vector<8x128xf32>
    %39 = arith.addf %36, %38 : vector<8x128xf32>
    %cst_19 = arith.constant dense<0.000000e+00> : vector<8xf32>
    %40 = vector.multi_reduction <add>, %39, %cst_19 [1] : vector<8x128xf32> to vector<8xf32>
    %41 = vector.shape_cast %40 : vector<8xf32> to vector<8x1xf32>
    %cst_20 = arith.constant 3.125000e-02 : f32
    %42 = vector.broadcast %cst_20 : f32 to vector<8x1xf32>
    %43 = arith.mulf %41, %42 : vector<8x1xf32>
    %44 = vector.broadcast %43 : vector<8x1xf32> to vector<8x128xf32>
    %45 = arith.subf %39, %44 : vector<8x128xf32>
    %46 = tpu.iota {dimensions = array<i32: 1>} : vector<8x128xi32>
    %c32_i32_21 = arith.constant 32 : i32
    %47 = vector.broadcast %c32_i32_21 : i32 to vector<8x128xi32>
    %48 = arith.cmpi slt, %46, %47 : vector<8x128xi32>
    %cst_22 = arith.constant 0.000000e+00 : f32
    %49 = vector.broadcast %cst_22 : f32 to vector<8x128xf32>
    %50 = arith.select %48, %45, %49 : vector<8x128xi1>, vector<8x128xf32>
    %51 = arith.mulf %50, %50 : vector<8x128xf32>
    %cst_23 = arith.constant dense<0.000000e+00> : vector<8xf32>
    %52 = vector.multi_reduction <add>, %51, %cst_23 [1] : vector<8x128xf32> to vector<8xf32>
    %53 = vector.shape_cast %52 : vector<8xf32> to vector<8x1xf32>
    %cst_24 = arith.constant 3.125000e-02 : f32
    %54 = vector.broadcast %cst_24 : f32 to vector<8x1xf32>
    %55 = arith.mulf %53, %54 : vector<8x1xf32>
    %cst_25 = arith.constant 9.99999974E-6 : f32
    %56 = vector.broadcast %cst_25 : f32 to vector<8x1xf32>
    %57 = arith.addf %55, %56 : vector<8x1xf32>
    %58 = math.rsqrt %57 : vector<8x1xf32>
    %59 = vector.broadcast %58 : vector<8x1xf32> to vector<8x128xf32>
    %60 = arith.mulf %50, %59 : vector<8x128xf32>
    %c1_26 = arith.constant 1 : index
    %c0_27 = arith.constant 0 : index
    %61 = vector.load %arg5[%c1_26, %c0_27] : memref<3x128xf32, #tpu.memory_space<vmem>>, vector<1x128xf32>
    %62 = vector.broadcast %61 : vector<1x128xf32> to vector<8x128xf32>
    %63 = arith.mulf %60, %62 : vector<8x128xf32>
    %c2_28 = arith.constant 2 : index
    %c0_29 = arith.constant 0 : index
    %64 = vector.load %arg5[%c2_28, %c0_29] : memref<3x128xf32, #tpu.memory_space<vmem>>, vector<1x128xf32>
    %65 = vector.broadcast %64 : vector<1x128xf32> to vector<8x128xf32>
    %66 = arith.addf %63, %65 : vector<8x128xf32>
    %cst_30 = arith.constant 0.000000e+00 : f32
    %67 = vector.broadcast %cst_30 : f32 to vector<8x128xf32>
    %68 = arith.maximumf %66, %67 : vector<8x128xf32>
    %c0_31 = arith.constant 0 : index
    %c0_32 = arith.constant 0 : index
    %69 = vector.load %arg6[%c0_31, %c0_32] : memref<128x256xf32, #tpu.memory_space<vmem>>, vector<128x256xf32>
    %cst_33 = arith.constant dense<0.000000e+00> : vector<8x256xf32>
    %70 = tpu.matmul %68, %69, %cst_33 {dimension_numbers = #tpu.dot_dimension_numbers<[1], [0], [0], [1], [0, 0, 1, 1], [], []>} : vector<8x128xf32>, vector<128x256xf32>, vector<8x256xf32> -> vector<8x256xf32>
    %71 = vector.extract_strided_slice %70 {offsets = [0, 0], sizes = [8, 128], strides = [1, 1]} : vector<8x256xf32> to vector<8x128xf32>
    %c0_34 = arith.constant 0 : index
    %c0_35 = arith.constant 0 : index
    %72 = vector.load %arg7[%c0_34, %c0_35] : memref<8x128xf32, #tpu.memory_space<vmem>>, vector<8x128xf32>
    tpu.vector_store %arg7[%c0_34, %c0_35], %71 {strides = array<i32>} : memref<8x128xf32, #tpu.memory_space<vmem>>, vector<8x128xf32>,
    %73 = vector.extract_strided_slice %70 {offsets = [0, 128], sizes = [8, 128], strides = [1, 1]} : vector<8x256xf32> to vector<8x128xf32>
    %cst_36 = arith.constant 5.000000e-01 : f32
    %74 = vector.broadcast %cst_36 : f32 to vector<8x128xf32>
    %75 = arith.mulf %73, %74 : vector<8x128xf32>
    %76 = math.exp %75 : vector<8x128xf32>
    %c0_37 = arith.constant 0 : index
    %c0_38 = arith.constant 0 : index
    %77 = vector.load %arg8[%c0_37, %c0_38] : memref<8x128xf32, #tpu.memory_space<vmem>>, vector<8x128xf32>
    tpu.vector_store %arg8[%c0_37, %c0_38], %76 {strides = array<i32>} : memref<8x128xf32, #tpu.memory_space<vmem>>, vector<8x128xf32>,
    return
  }
  func.func @transform_0(%arg0: i32) -> (i32, i32) {
    %c0_i32 = arith.constant 0 : i32
    %c0_i32_0 = arith.constant 0 : i32
    return %arg0, %c0_i32 : i32, i32
  }
  func.func @transform_1(%arg0: i32) -> (i32, i32) {
    %c0_i32 = arith.constant 0 : i32
    %c0_i32_0 = arith.constant 0 : i32
    %c0_i32_1 = arith.constant 0 : i32
    return %c0_i32, %c0_i32_0 : i32, i32
  }
  func.func @transform_2(%arg0: i32) -> (i32, i32) {
    %c0_i32 = arith.constant 0 : i32
    %c0_i32_0 = arith.constant 0 : i32
    %c0_i32_1 = arith.constant 0 : i32
    return %c0_i32, %c0_i32_0 : i32, i32
  }
  func.func @transform_3(%arg0: i32) -> (i32, i32) {
    %c0_i32 = arith.constant 0 : i32
    %c0_i32_0 = arith.constant 0 : i32
    %c0_i32_1 = arith.constant 0 : i32
    return %c0_i32, %c0_i32_0 : i32, i32
  }
  func.func @transform_4(%arg0: i32) -> (i32, i32) {
    %c0_i32 = arith.constant 0 : i32
    %c0_i32_0 = arith.constant 0 : i32
    %c0_i32_1 = arith.constant 0 : i32
    return %c0_i32, %c0_i32_0 : i32, i32
  }
  func.func @transform_5(%arg0: i32) -> (i32, i32) {
    %c0_i32 = arith.constant 0 : i32
    %c0_i32_0 = arith.constant 0 : i32
    %c0_i32_1 = arith.constant 0 : i32
    return %c0_i32, %c0_i32_0 : i32, i32
  }
  func.func @transform_6(%arg0: i32) -> (i32, i32) {
    %c0_i32 = arith.constant 0 : i32
    %c0_i32_0 = arith.constant 0 : i32
    return %arg0, %c0_i32 : i32, i32
  }
  func.func @transform_7(%arg0: i32) -> (i32, i32) {
    %c0_i32 = arith.constant 0 : i32
    %c0_i32_0 = arith.constant 0 : i32
    return %arg0, %c0_i32 : i32, i32
  }
}

</mosaic_0001>

<llo_original>
// kernel: _forward_impl.1
$region0: #{_forward_impl.1}
  #allocation0 [shape = 'u32[]', space=smem, size = 0x4, offset = 0x4, fixed_abs, tag = 'smem constant byte address 0x4 - core index']
  #allocation1 [shape = 'u32[144,128]{1,0:T(1,128)}', space=vmem, size = 0x12000, scoped, tag = 'internal scratch']
  %s0 = inlined_call_operand.vmem [shape: f32[8,128], index: 0, kind: input, shape index: {}]
  %s1 = inlined_call_operand.vmem [shape: f32[128,128], index: 1, kind: input, shape index: {}]
  %s2 = inlined_call_operand.vmem [shape: f32[3,128], index: 2, kind: input, shape index: {}]
  %s3 = inlined_call_operand.vmem [shape: f32[128,128], index: 3, kind: input, shape index: {}]
  %s4 = inlined_call_operand.vmem [shape: f32[3,128], index: 4, kind: input, shape index: {}]
  %s5 = inlined_call_operand.vmem [shape: f32[128,256], index: 5, kind: input, shape index: {}]
  %s6 = inlined_call_operand.hbm [shape: f32[8,128], index: 6, kind: output, shape index: {0}]
  %s7 = inlined_call_operand.hbm [shape: f32[8,128], index: 7, kind: output, shape index: {1}]
  %8 = xla_tuple %s6, %s7
  %s9 = sld [smem:[#allocation0]]
  $region42: #{_forward_impl.1} parent=0
    _
  %s11 = ssub.s32 1, %s9
  %s12 = scalar_select 0, %s11, %s9
  $region1: #{_forward_impl.1} parent=0
    #allocation2 [shape = 'u8[4096]{0}', space=vmem, size = 0x1000, scoped, tag = 'output window, operand 0, single buffered']
    #allocation3 [shape = 's32[1]{0}', space=sflag, size = 0x4, scoped, tag = 'scoped memory for _forward_impl.1']
    #allocation4 [shape = 'u8[4096]{0}', space=vmem, size = 0x1000, scoped, tag = 'output window, operand 1, single buffered']
    #allocation5 [shape = 's32[1]{0}', space=sflag, size = 0x4, scoped, tag = 'scoped memory for _forward_impl.1']
    %13 = vsyncpa [#allocation3], 0
    %14 = vsyncpa [#allocation5], 0
    // Predicated region
    $region2: #{_forward_impl.1} parent=1 // pred_check
      _
    $region3: #{_forward_impl.1} parent=1 // pred_check_branch
      %16 = sbr.rel (0) target = $region5
    $region4: #{_forward_impl.1} parent=1 // pred_region
      _
    $region5: #{_forward_impl.1} parent=1 // pred_fallthru
      _
    // Predicated region
    $region6: #{_forward_impl.1} parent=1 // pred_check
      _
    $region7: #{_forward_impl.1} parent=1 // pred_check_branch
      %18 = sbr.rel (0) target = $region9
    $region8: #{_forward_impl.1} parent=1 // pred_region
      _
    $region9: #{_forward_impl.1} parent=1 // pred_fallthru
      _
    // Predicated region
    $region10: #{_forward_impl.1} parent=1 // pred_check
      _
    $region11: #{_forward_impl.1} parent=1 // pred_check_branch
      %20 = sbr.rel (0) target = $region13
    $region12: #{_forward_impl.1} parent=1 // pred_region
      _
    $region13: #{_forward_impl.1} parent=1 // pred_fallthru
      _
    // Predicated region
    $region14: #{_forward_impl.1} parent=1 // pred_check
      _
    $region15: #{_forward_impl.1} parent=1 // pred_check_branch
      %22 = sbr.rel (0) target = $region17
    $region16: #{_forward_impl.1} parent=1 // pred_region
      _
    $region17: #{_forward_impl.1} parent=1 // pred_fallthru
      _
    // Predicated region
    $region18: #{_forward_impl.1} parent=1 // pred_check
      _
    $region19: #{_forward_impl.1} parent=1 // pred_check_branch
      %24 = sbr.rel (0) target = $region21
    $region20: #{_forward_impl.1} parent=1 // pred_region
      _
    $region21: #{_forward_impl.1} parent=1 // pred_fallthru
      _
    // Predicated region
    $region22: #{_forward_impl.1} parent=1 // pred_check
      _
    $region23: #{_forward_impl.1} parent=1 // pred_check_branch
      %26 = sbr.rel (0) target = $region25
    $region24: #{_forward_impl.1} parent=1 // pred_region
      _
    $region25: #{_forward_impl.1} parent=1 // pred_fallthru
      _
    %v27 = vld [vmem:[%s0] sm:$0xff]
    %v28 = vld [vmem:[%s1] sm:$0xff]
    %v29 = vld [vmem:[%s1 + $0x8] sm:$0xff]
    %v30 = vld [vmem:[%s1 + $0x10] sm:$0xff]
    %v31 = vld [vmem:[%s1 + $0x18] sm:$0xff]
    %v32 = vld [vmem:[%s1 + $0x20] sm:$0xff]
    %v33 = vld [vmem:[%s1 + $0x28] sm:$0xff]
    %v34 = vld [vmem:[%s1 + $0x30] sm:$0xff]
    %v35 = vld [vmem:[%s1 + $0x38] sm:$0xff]
    %v36 = vld [vmem:[%s1 + $0x40] sm:$0xff]
    %v37 = vld [vmem:[%s1 + $0x48] sm:$0xff]
    %v38 = vld [vmem:[%s1 + $0x50] sm:$0xff]
    %v39 = vld [vmem:[%s1 + $0x58] sm:$0xff]
    %v40 = vld [vmem:[%s1 + $0x60] sm:$0xff]
    %v41 = vld [vmem:[%s1 + $0x68] sm:$0xff]
    %v42 = vld [vmem:[%s1 + $0x70] sm:$0xff]
    %v43 = vld [vmem:[%s1 + $0x78] sm:$0xff]
    %v44 = vld [vmem:[%s2] sm:$0x1]
    %v45 = vlaneseq
    %v46 = vshrl.u32 %v45, 7
    %v47 = vsub.s32 0, %v46
    %v48 = vrot.slane %v44, %v47
    %49 = vmatprep.subr.mxu0 0.0
    %50 = vmatpush1.msra.mxu0 %v43
    %51 = vmatprep.subr.mxu0 0.0
    %52 = vmatpush1.msra.mxu0 %v42
    %53 = vmatprep.subr.mxu0 0.0
    %54 = vmatpush1.msra.mxu0 %v41
    %55 = vmatprep.subr.mxu0 0.0
    %56 = vmatpush1.msra.mxu0 %v40
    %57 = vmatprep.subr.mxu0 0.0
    %58 = vmatpush1.msra.mxu0 %v39
    %59 = vmatprep.subr.mxu0 0.0
    %60 = vmatpush1.msra.mxu0 %v38
    %61 = vmatprep.subr.mxu0 0.0
    %62 = vmatpush1.msra.mxu0 %v37
    %63 = vmatprep.subr.mxu0 0.0
    %64 = vmatpush1.msra.mxu0 %v36
    %65 = vmatprep.subr.mxu0 0.0
    %66 = vmatpush1.msra.mxu0 %v35
    %67 = vmatprep.subr.mxu0 0.0
    %68 = vmatpush1.msra.mxu0 %v34
    %69 = vmatprep.subr.mxu0 0.0
    %70 = vmatpush1.msra.mxu0 %v33
    %71 = vmatprep.subr.mxu0 0.0
    %72 = vmatpush1.msra.mxu0 %v32
    %73 = vmatprep.subr.mxu0 0.0
    %74 = vmatpush1.msra.mxu0 %v31
    %75 = vmatprep.subr.mxu0 0.0
    %76 = vmatpush1.msra.mxu0 %v30
    %77 = vmatprep.subr.mxu0 0.0
    %78 = vmatpush1.msra.mxu0 %v29
    %79 = vmatprep.subr.mxu0 0.0
    %80 = vmatpush1.msra.mxu0 %v28
    %81 = vmatprep.subr.mxu0 0.0
    %82 = vmatpush2.msra.mxu0 0.0
    %83 = vmatprep.subr.mxu0 0.0
    %84 = vmatpush2.msra.mxu0 0.0
    %85 = vmatprep.subr.mxu0 0.0
    %86 = vmatpush2.msra.mxu0 0.0
    %87 = vmatprep.subr.mxu0 0.0
    %88 = vmatpush2.msra.mxu0 0.0
    %89 = vmatprep.subr.mxu0 0.0
    %90 = vmatpush2.msra.mxu0 0.0
    %91 = vmatprep.subr.mxu0 0.0
    %92 = vmatpush2.msra.mxu0 0.0
    %93 = vmatprep.subr.mxu0 0.0
    %94 = vmatpush2.msra.mxu0 0.0
    %95 = vmatprep.subr.mxu0 0.0
    %96 = vmatpush2.msra.mxu0 0.0
    %97 = vmatprep.subr.mxu0 0.0
    %98 = vmatpush2.msra.mxu0 0.0
    %99 = vmatprep.subr.mxu0 0.0
    %100 = vmatpush2.msra.mxu0 0.0
    %101 = vmatprep.subr.mxu0 0.0
    %102 = vmatpush2.msra.mxu0 0.0
    %103 = vmatprep.subr.mxu0 0.0
    %104 = vmatpush2.msra.mxu0 0.0
    %105 = vmatprep.subr.mxu0 0.0
    %106 = vmatpush2.msra.mxu0 0.0
    %107 = vmatprep.subr.mxu0 0.0
    %108 = vmatpush2.msra.mxu0 0.0
    %109 = vmatprep.subr.mxu0 0.0
    %110 = vmatpush2.msra.mxu0 0.0
    %111 = vmatprep.subr.mxu0 0.0
    %112 = vmatpush2.msra.mxu0 0.0
    %113 = vmatprep.mubr.f32.mxu0 0.0
    %114 = vmatmul.mubr.f32.gmra.mxu0 %v27
    %v115 = vpop.f32.mrf.mxu0
    %v116 = vadd.f32 %v48, %v115
    %v117 = vpop.f32.mrf.mxu0
    %118 = vdwg.mxu0
    %119 = vadd.xlane.f32.xlu0 %v116
    %v120 = vpop.xlane.xlu0 %119
    %v121 = vmul.f32 %v120, 0.03125
    %v122 = vsub.f32 %v116, %v121
    %v123 = vlaneseq
    %v124 = vand.u32 %v123, 127
    %vm125 = vcmp.lt.s32.totalorder %v124, 32
    %v126 = vsel %vm125, %v122, 0.0
    %v127 = vmul.f32 %v126, %v126
    %128 = vadd.xlane.f32.xlu0 %v127
    %v129 = vpop.xlane.xlu0 %128
    %v130 = vmul.f32 %v129, 0.03125
    %v131 = vadd.f32 %v130, 1e-05
    %v132 = vrsqrt.pop %v131
    %v133 = vmul.f32 %v126, %v132
    %v134 = vld [vmem:[%s2 + $0x1] sm:$0x1]
    %v135 = vlaneseq
    %v136 = vshrl.u32 %v135, 7
    %v137 = vsub.s32 0, %v136
    %v138 = vrot.slane %v134, %v137
    %v139 = vmul.f32 %v133, %v138
    %v140 = vld [vmem:[%s2 + $0x2] sm:$0x1]
    %v141 = vlaneseq
    %v142 = vshrl.u32 %v141, 7
    %v143 = vsub.s32 0, %v142
    %v144 = vrot.slane %v140, %v143
    %v145 = vadd.f32 %v139, %v144
    %v146 = vmax.f32 %v145, 0.0
    %v147 = vld [vmem:[%s3] sm:$0xff]
    %v148 = vld [vmem:[%s3 + $0x8] sm:$0xff]
    %v149 = vld [vmem:[%s3 + $0x10] sm:$0xff]
    %v150 = vld [vmem:[%s3 + $0x18] sm:$0xff]
    %v151 = vld [vmem:[%s3 + $0x20] sm:$0xff]
    %v152 = vld [vmem:[%s3 + $0x28] sm:$0xff]
    %v153 = vld [vmem:[%s3 + $0x30] sm:$0xff]
    %v154 = vld [vmem:[%s3 + $0x38] sm:$0xff]
    %v155 = vld [vmem:[%s3 + $0x40] sm:$0xff]
    %v156 = vld [vmem:[%s3 + $0x48] sm:$0xff]
    %v157 = vld [vmem:[%s3 + $0x50] sm:$0xff]
    %v158 = vld [vmem:[%s3 + $0x58] sm:$0xff]
    %v159 = vld [vmem:[%s3 + $0x60] sm:$0xff]
    %v160 = vld [vmem:[%s3 + $0x68] sm:$0xff]
    %v161 = vld [vmem:[%s3 + $0x70] sm:$0xff]
    %v162 = vld [vmem:[%s3 + $0x78] sm:$0xff]
    %v163 = vld [vmem:[%s4] sm:$0x1]
    %v164 = vlaneseq
    %v165 = vshrl.u32 %v164, 7
    %v166 = vsub.s32 0, %v165
    %v167 = vrot.slane %v163, %v166
    %168 = vmatprep.subr.mxu0 0.0
    %169 = vmatpush1.msra.mxu0 %v162
    %170 = vmatprep.subr.mxu0 0.0
    %171 = vmatpush1.msra.mxu0 %v161
    %172 = vmatprep.subr.mxu0 0.0
    %173 = vmatpush1.msra.mxu0 %v160
    %174 = vmatprep.subr.mxu0 0.0
    %175 = vmatpush1.msra.mxu0 %v159
    %176 = vmatprep.subr.mxu0 0.0
    %177 = vmatpush1.msra.mxu0 %v158
    %178 = vmatprep.subr.mxu0 0.0
    %179 = vmatpush1.msra.mxu0 %v157
    %180 = vmatprep.subr.mxu0 0.0
    %181 = vmatpush1.msra.mxu0 %v156
    %182 = vmatprep.subr.mxu0 0.0
    %183 = vmatpush1.msra.mxu0 %v155
    %184 = vmatprep.subr.mxu0 0.0
    %185 = vmatpush1.msra.mxu0 %v154
    %186 = vmatprep.subr.mxu0 0.0
    %187 = vmatpush1.msra.mxu0 %v153
    %188 = vmatprep.subr.mxu0 0.0
    %189 = vmatpush1.msra.mxu0 %v152
    %190 = vmatprep.subr.mxu0 0.0
    %191 = vmatpush1.msra.mxu0 %v151
    %192 = vmatprep.subr.mxu0 0.0
    %193 = vmatpush1.msra.mxu0 %v150
    %194 = vmatprep.subr.mxu0 0.0
    %195 = vmatpush1.msra.mxu0 %v149
    %196 = vmatprep.subr.mxu0 0.0
    %197 = vmatpush1.msra.mxu0 %v148
    %198 = vmatprep.subr.mxu0 0.0
    %199 = vmatpush1.msra.mxu0 %v147
    %200 = vmatprep.subr.mxu0 0.0
    %201 = vmatpush2.msra.mxu0 0.0
    %202 = vmatprep.subr.mxu0 0.0
    %203 = vmatpush2.msra.mxu0 0.0
    %204 = vmatprep.subr.mxu0 0.0
    %205 = vmatpush2.msra.mxu0 0.0
    %206 = vmatprep.subr.mxu0 0.0
    %207 = vmatpush2.msra.mxu0 0.0
    %208 = vmatprep.subr.mxu0 0.0
    %209 = vmatpush2.msra.mxu0 0.0
    %210 = vmatprep.subr.mxu0 0.0
    %211 = vmatpush2.msra.mxu0 0.0
    %212 = vmatprep.subr.mxu0 0.0
    %213 = vmatpush2.msra.mxu0 0.0
    %214 = vmatprep.subr.mxu0 0.0
    %215 = vmatpush2.msra.mxu0 0.0
    %216 = vmatprep.subr.mxu0 0.0
    %217 = vmatpush2.msra.mxu0 0.0
    %218 = vmatprep.subr.mxu0 0.0
    %219 = vmatpush2.msra.mxu0 0.0
    %220 = vmatprep.subr.mxu0 0.0
    %221 = vmatpush2.msra.mxu0 0.0
    %222 = vmatprep.subr.mxu0 0.0
    %223 = vmatpush2.msra.mxu0 0.0
    %224 = vmatprep.subr.mxu0 0.0
    %225 = vmatpush2.msra.mxu0 0.0
    %226 = vmatprep.subr.mxu0 0.0
    %227 = vmatpush2.msra.mxu0 0.0
    %228 = vmatprep.subr.mxu0 0.0
    %229 = vmatpush2.msra.mxu0 0.0
    %230 = vmatprep.subr.mxu0 0.0
    %231 = vmatpush2.msra.mxu0 0.0
    %232 = vmatprep.mubr.f32.mxu0 0.0
    %233 = vmatmul.mubr.f32.gmra.mxu0 %v146
    %v234 = vpop.f32.mrf.mxu0
    %v235 = vadd.f32 %v167, %v234
    %v236 = vpop.f32.mrf.mxu0
    %237 = vdwg.mxu0
    %238 = vadd.xlane.f32.xlu0 %v235
    %v239 = vpop.xlane.xlu0 %238
    %v240 = vmul.f32 %v239, 0.03125
    %v241 = vsub.f32 %v235, %v240
    %v242 = vsel %vm125, %v241, 0.0
    %v243 = vmul.f32 %v242, %v242
    %244 = vadd.xlane.f32.xlu0 %v243
    %v245 = vpop.xlane.xlu0 %244
    %v246 = vmul.f32 %v245, 0.03125
    %v247 = vadd.f32 %v246, 1e-05
    %v248 = vrsqrt.pop %v247
    %v249 = vmul.f32 %v242, %v248
    %v250 = vld [vmem:[%s4 + $0x1] sm:$0x1]
    %v251 = vlaneseq
    %v252 = vshrl.u32 %v251, 7
    %v253 = vsub.s32 0, %v252
    %v254 = vrot.slane %v250, %v253
    %v255 = vmul.f32 %v249, %v254
    %v256 = vld [vmem:[%s4 + $0x2] sm:$0x1]
    %v257 = vlaneseq
    %v258 = vshrl.u32 %v257, 7
    %v259 = vsub.s32 0, %v258
    %v260 = vrot.slane %v256, %v259
    %v261 = vadd.f32 %v255, %v260
    %v262 = vmax.f32 %v261, 0.0
    %v263 = vld [vmem:[%s5] sm:$0xff]
    %v264 = vld [vmem:[%s5 + $0x8] sm:$0xff]
    %v265 = vld [vmem:[%s5 + $0x10] sm:$0xff]
    %v266 = vld [vmem:[%s5 + $0x18] sm:$0xff]
    %v267 = vld [vmem:[%s5 + $0x20] sm:$0xff]
    %v268 = vld [vmem:[%s5 + $0x28] sm:$0xff]
    %v269 = vld [vmem:[%s5 + $0x30] sm:$0xff]
    %v270 = vld [vmem:[%s5 + $0x38] sm:$0xff]
    %v271 = vld [vmem:[%s5 + $0x40] sm:$0xff]
    %v272 = vld [vmem:[%s5 + $0x48] sm:$0xff]
    %v273 = vld [vmem:[%s5 + $0x50] sm:$0xff]
    %v274 = vld [vmem:[%s5 + $0x58] sm:$0xff]
    %v275 = vld [vmem:[%s5 + $0x60] sm:$0xff]
    %v276 = vld [vmem:[%s5 + $0x68] sm:$0xff]
    %v277 = vld [vmem:[%s5 + $0x70] sm:$0xff]
    %v278 = vld [vmem:[%s5 + $0x78] sm:$0xff]
    %v279 = vld [vmem:[%s5 + $0x80] sm:$0xff]
    %v280 = vld [vmem:[%s5 + $0x88] sm:$0xff]
    %v281 = vld [vmem:[%s5 + $0x90] sm:$0xff]
    %v282 = vld [vmem:[%s5 + $0x98] sm:$0xff]
    %v283 = vld [vmem:[%s5 + $0xa0] sm:$0xff]
    %v284 = vld [vmem:[%s5 + $0xa8] sm:$0xff]
    %v285 = vld [vmem:[%s5 + $0xb0] sm:$0xff]
    %v286 = vld [vmem:[%s5 + $0xb8] sm:$0xff]
    %v287 = vld [vmem:[%s5 + $0xc0] sm:$0xff]
    %v288 = vld [vmem:[%s5 + $0xc8] sm:$0xff]
    %v289 = vld [vmem:[%s5 + $0xd0] sm:$0xff]
    %v290 = vld [vmem:[%s5 + $0xd8] sm:$0xff]
    %v291 = vld [vmem:[%s5 + $0xe0] sm:$0xff]
    %v292 = vld [vmem:[%s5 + $0xe8] sm:$0xff]
    %v293 = vld [vmem:[%s5 + $0xf0] sm:$0xff]
    %v294 = vld [vmem:[%s5 + $0xf8] sm:$0xff]
    %295 = vmatprep.subr.mxu0 %v294
    %296 = vmatpush1.msra.mxu0 %v293
    %297 = vmatprep.subr.mxu0 %v292
    %298 = vmatpush1.msra.mxu0 %v291
    %299 = vmatprep.subr.mxu0 %v290
    %300 = vmatpush1.msra.mxu0 %v289
    %301 = vmatprep.subr.mxu0 %v288
    %302 = vmatpush1.msra.mxu0 %v287
    %303 = vmatprep.subr.mxu0 %v286
    %304 = vmatpush1.msra.mxu0 %v285
    %305 = vmatprep.subr.mxu0 %v284
    %306 = vmatpush1.msra.mxu0 %v283
    %307 = vmatprep.subr.mxu0 %v282
    %308 = vmatpush1.msra.mxu0 %v281
    %309 = vmatprep.subr.mxu0 %v280
    %310 = vmatpush1.msra.mxu0 %v279
    %311 = vmatprep.subr.mxu0 %v278
    %312 = vmatpush1.msra.mxu0 %v277
    %313 = vmatprep.subr.mxu0 %v276
    %314 = vmatpush1.msra.mxu0 %v275
    %315 = vmatprep.subr.mxu0 %v274
    %316 = vmatpush1.msra.mxu0 %v273
    %317 = vmatprep.subr.mxu0 %v272
    %318 = vmatpush1.msra.mxu0 %v271
    %319 = vmatprep.subr.mxu0 %v270
    %320 = vmatpush1.msra.mxu0 %v269
    %321 = vmatprep.subr.mxu0 %v268
    %322 = vmatpush1.msra.mxu0 %v267
    %323 = vmatprep.subr.mxu0 %v266
    %324 = vmatpush1.msra.mxu0 %v265
    %325 = vmatprep.subr.mxu0 %v264
    %326 = vmatpush1.msra.mxu0 %v263
    %327 = vmatprep.subr.mxu0 0.0
    %328 = vmatpush2.msra.mxu0 0.0
    %329 = vmatprep.subr.mxu0 0.0
    %330 = vmatpush2.msra.mxu0 0.0
    %331 = vmatprep.subr.mxu0 0.0
    %332 = vmatpush2.msra.mxu0 0.0
    %333 = vmatprep.subr.mxu0 0.0
    %334 = vmatpush2.msra.mxu0 0.0
    %335 = vmatprep.subr.mxu0 0.0
    %336 = vmatpush2.msra.mxu0 0.0
    %337 = vmatprep.subr.mxu0 0.0
    %338 = vmatpush2.msra.mxu0 0.0
    %339 = vmatprep.subr.mxu0 0.0
    %340 = vmatpush2.msra.mxu0 0.0
    %341 = vmatprep.subr.mxu0 0.0
    %342 = vmatpush2.msra.mxu0 0.0
    %343 = vmatprep.subr.mxu0 0.0
    %344 = vmatpush2.msra.mxu0 0.0
    %345 = vmatprep.subr.mxu0 0.0
    %346 = vmatpush2.msra.mxu0 0.0
    %347 = vmatprep.subr.mxu0 0.0
    %348 = vmatpush2.msra.mxu0 0.0
    %349 = vmatprep.subr.mxu0 0.0
    %350 = vmatpush2.msra.mxu0 0.0
    %351 = vmatprep.subr.mxu0 0.0
    %352 = vmatpush2.msra.mxu0 0.0
    %353 = vmatprep.subr.mxu0 0.0
    %354 = vmatpush2.msra.mxu0 0.0
    %355 = vmatprep.subr.mxu0 0.0
    %356 = vmatpush2.msra.mxu0 0.0
    %357 = vmatprep.subr.mxu0 0.0
    %358 = vmatpush2.msra.mxu0 0.0
    %359 = vmatprep.mubr.f32.mxu0 0.0
    %360 = vmatmul.mubr.f32.gmra.mxu0 %v262
    %v361 = vpop.f32.mrf.mxu0
    %v362 = vadd.f32 0.0, %v361
    %v363 = vpop.f32.mrf.mxu0
    %v364 = vadd.f32 0.0, %v363
    %365 = vdwg.mxu0
    %366 = vst [vmem:[#allocation2] sm:$0xff] %v362
    %v367 = vmul.f32 %v364, 0.5
    %v368 = vmul.f32 %v367, 1.442695
    %v369 = vpow.pop %v368
    %370 = vst [vmem:[#allocation4] sm:$0xff] %v369
    // Predicated region
    $region26: #{_forward_impl.1} parent=1 // pred_check
      _
    $region27: #{_forward_impl.1} parent=1 // pred_check_branch
      %372 = sbr.rel (0) target = $region29
    $region28: #{_forward_impl.1} parent=1 // pred_region
      %s374 = ssub.s32 128, 128
      %375 = vsyncadd [#allocation3], %s374
      %s377 = sshll.u32 [#allocation2], 4
      %s378 = int_to_ptr.vmem [resolvable:$true] %s377
      %380 = dma.vmem_to_hbm [thread:$0]  %s378, 128, %s6, [#allocation3]
    $region29: #{_forward_impl.1} parent=1 // pred_fallthru
      _
    // Predicated region
    $region30: #{_forward_impl.1} parent=1 // pred_check
      _
    $region31: #{_forward_impl.1} parent=1 // pred_check_branch
      %382 = sbr.rel (0) target = $region33
    $region32: #{_forward_impl.1} parent=1 // pred_region
      %s384 = ssub.s32 128, 128
      %385 = vsyncadd [#allocation5], %s384
      %s387 = sshll.u32 [#allocation4], 4
      %s388 = int_to_ptr.vmem [resolvable:$true] %s387
      %390 = dma.vmem_to_hbm [thread:$0]  %s388, 128, %s7, [#allocation5]
    $region33: #{_forward_impl.1} parent=1 // pred_fallthru
      _
    // Predicated region
    $region34: #{_forward_impl.1} parent=1 // pred_check
      _
    $region35: #{_forward_impl.1} parent=1 // pred_check_branch
      %392 = sbr.rel (0) target = $region37
    $region36: #{_forward_impl.1} parent=1 // pred_region
      %393 = dma.done [#allocation3], 128
    $region37: #{_forward_impl.1} parent=1 // pred_fallthru
      _
    // Predicated region
    $region38: #{_forward_impl.1} parent=1 // pred_check
      _
    $region39: #{_forward_impl.1} parent=1 // pred_check_branch
      %395 = sbr.rel (0) target = $region41
    $region40: #{_forward_impl.1} parent=1 // pred_region
      %396 = dma.done [#allocation5], 128
    $region41: #{_forward_impl.1} parent=1 // pred_fallthru
      _
    %397 = vsyncpa [#allocation3], 1
    %398 = vsyncpa [#allocation5], 1

</llo_original>
